<compile_context>
chip_gen: v7x
topology: tpu7x:2x2x1
jax: 0.10.0
libtpu: 0.0.40
codegen_flags: <defaults>
</compile_context>

<pallas_src>
import math

import jax
import jax.numpy as jnp
from jax.experimental import pallas as pl
from jax.experimental.pallas import tpu as pltpu


def _round_up(x, m):
    return ((x + m - 1) // m) * m


def _make_kernel(store_features):
    """Kernel factory: variant with / without the feature writeback."""

    if store_features:
        def kernel(x_ref, wf_ref, bf_ref, wh_ref, bh_ref, y_ref, feat_ref, acc_ref):
            k = pl.program_id(1)

            @pl.when(k == 0)
            def _():
                # Fold the backbone bias into the accumulator init (hoisted broadcast).
                acc_ref[...] = jnp.broadcast_to(bf_ref[...], acc_ref.shape)

            acc_ref[...] += jnp.dot(x_ref[...], wf_ref[...],
                                    preferred_element_type=jnp.float32)

            @pl.when(k == pl.num_programs(1) - 1)
            def _():
                feats = acc_ref[...]                     # pre-activation features
                feat_ref[...] = feats.astype(feat_ref.dtype)
                act = jnp.maximum(feats, 0.0).astype(wh_ref.dtype)   # bf16 for MXU
                y_ref[...] = (jnp.dot(act, wh_ref[...],
                                      preferred_element_type=jnp.float32)
                              + bh_ref[...]).astype(y_ref.dtype)
        return kernel

    def kernel(x_ref, wf_ref, bf_ref, wh_ref, bh_ref, y_ref, acc_ref):
        k = pl.program_id(1)

        @pl.when(k == 0)
        def _():
            acc_ref[...] = jnp.broadcast_to(bf_ref[...], acc_ref.shape)

        acc_ref[...] += jnp.dot(x_ref[...], wf_ref[...],
                                preferred_element_type=jnp.float32)

        @pl.when(k == pl.num_programs(1) - 1)
        def _():
            act = jnp.maximum(acc_ref[...], 0.0).astype(wh_ref.dtype)
            y_ref[...] = (jnp.dot(act, wh_ref[...],
                                  preferred_element_type=jnp.float32)
                          + bh_ref[...]).astype(y_ref.dtype)
    return kernel


def prepare_lll_params(wf, bf, head_ws, head_bs, compute_dtype=jnp.bfloat16):
    """One-time parameter preprocessing (hoisted out of the forward path).

    wf, bf:   backbone Linear params, PyTorch layout: wf [out_size, D_in], bf [out_size].
    head_ws:  list of head weights, each [n_out_i, out_size] (PyTorch layout).
    head_bs:  list of head biases, each [n_out_i].
    Weights are transposed to [in, out], heads concatenated, everything padded
    to lane-dense (128-multiple) shapes and cast to the MXU compute dtype.
    """
    F = int(wf.shape[0])                      # LLL_Net.out_size
    D_in = int(wf.shape[1])
    head_sizes = [int(w.shape[0]) for w in head_ws]
    total_out = sum(head_sizes)

    Fp = _round_up(F, 128)
    Op = _round_up(total_out, 128)
    Dp = _round_up(D_in, 128)

    wf_t = jnp.zeros((Dp, Fp), compute_dtype).at[:D_in, :F].set(
        wf.T.astype(compute_dtype))
    bf_p = jnp.zeros((1, Fp), jnp.float32).at[0, :F].set(bf.astype(jnp.float32))

    wh_t = jnp.concatenate([w.T for w in head_ws], axis=1)        # [F, total_out]
    wh_p = jnp.zeros((Fp, Op), compute_dtype).at[:F, :total_out].set(
        wh_t.astype(compute_dtype))
    bh_p = jnp.zeros((1, Op), jnp.float32).at[0, :total_out].set(
        jnp.concatenate(head_bs).astype(jnp.float32))

    return dict(wf_t=wf_t, bf=bf_p, wh_t=wh_p, bh=bh_p,
                D_in=D_in, Dp=Dp, F=F, Fp=Fp,
                head_sizes=head_sizes, total_out=total_out, Op=Op,
                compute_dtype=compute_dtype)


def lll_net_forward(x_nchw, params, return_features=False):
    """Pallas implementation of LLL_Net.forward (multi-head list output)."""
    B = int(x_nchw.shape[0])
    D_in, Dp = params["D_in"], params["Dp"]
    F, Fp = params["F"], params["Fp"]
    Op = params["Op"]
    dt = params["compute_dtype"]

    x_flat = x_nchw.reshape(B, -1).astype(dt)            # == x.view(B, -1)
    assert x_flat.shape[1] == D_in

    # Tile sizes: sublane dim >= 8, lane dims multiples of 128.
    TM = 128 if B >= 128 else _round_up(max(B, 8), 8)
    Bp = _round_up(B, TM)
    TK = next(t for t in (512, 256, 128) if Dp % t == 0)

    x_p = jnp.zeros((Bp, Dp), dt).at[:B, :D_in].set(x_flat)

    gm, gk = Bp // TM, Dp // TK
    kernel = _make_kernel(return_features)

    out_shape = [jax.ShapeDtypeStruct((Bp, Op), jnp.float32)]
    out_specs = [pl.BlockSpec((TM, Op), lambda i, k: (i, 0))]
    if return_features:
        out_shape.append(jax.ShapeDtypeStruct((Bp, Fp), jnp.float32))
        out_specs.append(pl.BlockSpec((TM, Fp), lambda i, k: (i, 0)))

    # VMEM budget: double-buffered gridded operands + resident weights + acc.
    isz = jnp.dtype(dt).itemsize
    vmem = (2 * (TM * TK * isz + TK * Fp * isz)                  # x / wf tiles (x2 buf)
            + Fp * Op * isz + (Fp + Op) * 4                      # wh + biases (resident)
            + 2 * TM * Op * 4                                    # y tile (x2 buf)
            + (2 * TM * Fp * 4 if return_features else 0)        # feat tile
            + TM * Fp * 4)                                       # f32 accumulator
    vmem_limit = int(min(max(2 * vmem, 16 * 2**20), 100 * 2**20))

    outs = pl.pallas_call(
        kernel,
        out_shape=tuple(out_shape),
        grid_spec=pltpu.PrefetchScalarGridSpec(
            num_scalar_prefetch=0,
            grid=(gm, gk),                                       # reduction axis last
            in_specs=[
                pl.BlockSpec((TM, TK), lambda i, k: (i, k)),     # x tile
                pl.BlockSpec((TK, Fp), lambda i, k: (k, 0)),     # backbone weight tile
                pl.BlockSpec((1, Fp), lambda i, k: (0, 0)),      # backbone bias
                pl.BlockSpec((Fp, Op), lambda i, k: (0, 0)),     # fused head weights
                pl.BlockSpec((1, Op), lambda i, k: (0, 0)),      # fused head biases
            ],
            out_specs=tuple(out_specs),
            scratch_shapes=[pltpu.VMEM((TM, Fp), jnp.float32)],
        ),
        compiler_params=pltpu.CompilerParams(
            dimension_semantics=("parallel", "arbitrary"),
            vmem_limit_bytes=vmem_limit),
    )(x_p, params["wf_t"], params["bf"], params["wh_t"], params["bh"])

    # Slice padding off and split the concatenated head output into the list.
    y_all = outs[0][:B, :params["total_out"]]
    y, off = [], 0
    for n in params["head_sizes"]:
        y.append(y_all[:, off:off + n])
        off += n
    if return_features:
        return y, outs[1][:B, :F]
    return y


def _linear_init(key, out_features, in_features):
    """Deterministic nn.Linear-style init: U(-1/sqrt(in), 1/sqrt(in))."""
    kw, kb = jax.random.split(key)
    bound = 1.0 / math.sqrt(float(in_features))
    w = jax.random.uniform(kw, (out_features, in_features), jnp.float32,
                           minval=-bound, maxval=bound)
    b = jax.random.uniform(kb, (out_features,), jnp.float32,
                           minval=-bound, maxval=bound)
    return w, b


if __name__ == "__main__":
    key = jax.random.PRNGKey(0)

    # Small shapes: batch=2, channels=4, spatial=16, out_size (feat dim)=32.
    B, C, H, W = 2, 4, 16, 16
    D_in = C * H * W
    out_size = 32
    head_sizes = [10, 5, 7]          # three incremental-learning heads

    keys = jax.random.split(key, 2 + len(head_sizes))
    x = jax.random.normal(keys[0], (B, C, H, W), jnp.float32)
    wf, bf = _linear_init(keys[1], out_size, D_in)
    head_ws, head_bs = [], []
    for i, n in enumerate(head_sizes):
        hw, hb = _linear_init(keys[2 + i], n, out_size)
        head_ws.append(hw)
        head_bs.append(hb)

    # TODO(synk): the real backbone's extract_features is injected at LLL_Net
    # construction time (arbitrary CNN); modeled here as flatten + Linear.
    params = prepare_lll_params(wf, bf, head_ws, head_bs,
                                compute_dtype=jnp.bfloat16)

    # Training-style call (features returned) and inference-style call (no
    # feature writeback) both exercised.
    y_list, feats = lll_net_forward(x, params, return_features=True)
    y_list = [jax.block_until_ready(y) for y in y_list]
    feats = jax.block_until_ready(feats)
    y_only = [jax.block_until_ready(y)
              for y in lll_net_forward(x, params, return_features=False)]

    # Pure-JAX reference on the same bf16-rounded operands, f32 accumulation.
    rnd = lambda a: a.astype(jnp.bfloat16).astype(jnp.float32)
    hi = jax.lax.Precision.HIGHEST
    x_flat = x.reshape(B, -1)
    feats_ref = jnp.dot(rnd(x_flat), rnd(wf.T), precision=hi) + bf
    act_ref = jnp.maximum(feats_ref, 0.0)
    y_ref = [jnp.dot(rnd(act_ref), rnd(hw.T), precision=hi) + hb
             for hw, hb in zip(head_ws, head_bs)]

    assert feats.shape == (B, out_size)
    assert jnp.allclose(feats, feats_ref, atol=1e-2, rtol=1e-2), \
        float(jnp.max(jnp.abs(feats - feats_ref)))
    for yo, yi, yr in zip(y_list, y_only, y_ref):
        assert yo.shape == yr.shape and yi.shape == yr.shape
        assert jnp.allclose(yo, yr, atol=1e-2, rtol=1e-2)
        assert jnp.allclose(yi, yr, atol=1e-2, rtol=1e-2)

    print("KERNEL_OK")
</pallas_src>

<mosaic_0001>
module attributes {stable_mosaic.version = 11 : i64} {
  func.func @kernel(%arg0: i32, %arg1: i32, %arg2: memref<8x512xbf16, #tpu.memory_space<vmem>>, %arg3: memref<512x128xbf16, #tpu.memory_space<vmem>>, %arg4: memref<1x128xf32, #tpu.memory_space<vmem>>, %arg5: memref<128x128xbf16, #tpu.memory_space<vmem>>, %arg6: memref<1x128xf32, #tpu.memory_space<vmem>>, %arg7: memref<8x128xf32, #tpu.memory_space<vmem>>, %arg8: memref<8x128xf32, #tpu.memory_space<vmem>>, %arg9: memref<8x128xf32, #tpu.memory_space<vmem>>) attributes {dimension_semantics = [#tpu.dimension_semantics<parallel>, #tpu.dimension_semantics<arbitrary>], iteration_bounds = array<i64: 1, 2>, scalar_prefetch = 0 : i64, scratch_operands = 1 : i64, tpu.core_type = #tpu.core_type<tc>, window_params = [{transform_indices = @transform_0, window_bounds = array<i64: 8, 512>}, {transform_indices = @transform_1, window_bounds = array<i64: 512, 128>}, {pipeline_mode = #tpu.pipeline_mode<synchronous>, transform_indices = @transform_2, window_bounds = array<i64: 1, 128>}, {pipeline_mode = #tpu.pipeline_mode<synchronous>, transform_indices = @transform_3, window_bounds = array<i64: 128, 128>}, {pipeline_mode = #tpu.pipeline_mode<synchronous>, transform_indices = @transform_4, window_bounds = array<i64: 1, 128>}, {transform_indices = @transform_5, window_bounds = array<i64: 8, 128>}, {transform_indices = @transform_6, window_bounds = array<i64: 8, 128>}]} {
    %c0_i32 = arith.constant 0 : i32
    %0 = arith.cmpi eq, %arg1, %c0_i32 : i32
    %1 = arith.extui %0 : i1 to i32
    %c0_i32_0 = arith.constant 0 : i32
    %2 = arith.cmpi ne, %1, %c0_i32_0 : i32
    scf.if %2 {
      %c0_9 = arith.constant 0 : index
      %c0_10 = arith.constant 0 : index
      %12 = vector.load %arg4[%c0_9, %c0_10] : memref<1x128xf32, #tpu.memory_space<vmem>>, vector<1x128xf32>
      %13 = vector.shape_cast %12 : vector<1x128xf32> to vector<1x128xf32>
      %14 = vector.broadcast %13 : vector<1x128xf32> to vector<8x128xf32>
      %c0_11 = arith.constant 0 : index
      %c0_12 = arith.constant 0 : index
      %15 = vector.load %arg9[%c0_11, %c0_12] : memref<8x128xf32, #tpu.memory_space<vmem>>, vector<8x128xf32>
      tpu.vector_store %arg9[%c0_11, %c0_12], %14 {strides = array<i32>} : memref<8x128xf32, #tpu.memory_space<vmem>>, vector<8x128xf32>,
    } else {
    }
    %c0 = arith.constant 0 : index
    %c0_1 = arith.constant 0 : index
    %3 = vector.load %arg9[%c0, %c0_1] : memref<8x128xf32, #tpu.memory_space<vmem>>, vector<8x128xf32>
    %c0_2 = arith.constant 0 : index
    %c0_3 = arith.constant 0 : index
    %4 = vector.load %arg2[%c0_2, %c0_3] : memref<8x512xbf16, #tpu.memory_space<vmem>>, vector<8x512xbf16>
    %c0_4 = arith.constant 0 : index
    %c0_5 = arith.constant 0 : index
    %5 = vector.load %arg3[%c0_4, %c0_5] : memref<512x128xbf16, #tpu.memory_space<vmem>>, vector<512x128xbf16>
    %cst = arith.constant dense<0.000000e+00> : vector<8x128xf32>
    %6 = tpu.matmul %4, %5, %cst {dimension_numbers = #tpu.dot_dimension_numbers<[1], [0], [0], [1], [0, 0, 1, 1], [], []>} : vector<8x512xbf16>, vector<512x128xbf16>, vector<8x128xf32> -> vector<8x128xf32>
    %7 = arith.addf %3, %6 : vector<8x128xf32>
    %c0_6 = arith.constant 0 : index
    %c0_7 = arith.constant 0 : index
    %8 = vector.load %arg9[%c0_6, %c0_7] : memref<8x128xf32, #tpu.memory_space<vmem>>, vector<8x128xf32>
    tpu.vector_store %arg9[%c0_6, %c0_7], %7 {strides = array<i32>} : memref<8x128xf32, #tpu.memory_space<vmem>>, vector<8x128xf32>,
    %c1_i32 = arith.constant 1 : i32
    %9 = arith.cmpi eq, %arg1, %c1_i32 : i32
    %10 = arith.extui %9 : i1 to i32
    %c0_i32_8 = arith.constant 0 : i32
    %11 = arith.cmpi ne, %10, %c0_i32_8 : i32
    scf.if %11 {
      %c0_9 = arith.constant 0 : index
      %c0_10 = arith.constant 0 : index
      %12 = vector.load %arg9[%c0_9, %c0_10] : memref<8x128xf32, #tpu.memory_space<vmem>>, vector<8x128xf32>
      %c0_11 = arith.constant 0 : index
      %c0_12 = arith.constant 0 : index
      %13 = vector.load %arg8[%c0_11, %c0_12] : memref<8x128xf32, #tpu.memory_space<vmem>>, vector<8x128xf32>
      tpu.vector_store %arg8[%c0_11, %c0_12], %12 {strides = array<i32>} : memref<8x128xf32, #tpu.memory_space<vmem>>, vector<8x128xf32>,
      %cst_13 = arith.constant 0.000000e+00 : f32
      %14 = vector.broadcast %cst_13 : f32 to vector<8x128xf32>
      %15 = arith.maximumf %12, %14 : vector<8x128xf32>
      %16 = arith.truncf %15 : vector<8x128xf32> to vector<8x128xbf16>
      %c0_14 = arith.constant 0 : index
      %c0_15 = arith.constant 0 : index
      %17 = vector.load %arg5[%c0_14, %c0_15] : memref<128x128xbf16, #tpu.memory_space<vmem>>, vector<128x128xbf16>
      %cst_16 = arith.constant dense<0.000000e+00> : vector<8x128xf32>
      %18 = tpu.matmul %16, %17, %cst_16 {dimension_numbers = #tpu.dot_dimension_numbers<[1], [0], [0], [1], [0, 0, 1, 1], [], []>} : vector<8x128xbf16>, vector<128x128xbf16>, vector<8x128xf32> -> vector<8x128xf32>
      %c0_17 = arith.constant 0 : index
      %c0_18 = arith.constant 0 : index
      %19 = vector.load %arg6[%c0_17, %c0_18] : memref<1x128xf32, #tpu.memory_space<vmem>>, vector<1x128xf32>
      %20 = vector.broadcast %19 : vector<1x128xf32> to vector<8x128xf32>
      %21 = arith.addf %18, %20 : vector<8x128xf32>
      %c0_19 = arith.constant 0 : index
      %c0_20 = arith.constant 0 : index
      %22 = vector.load %arg7[%c0_19, %c0_20] : memref<8x128xf32, #tpu.memory_space<vmem>>, vector<8x128xf32>
      tpu.vector_store %arg7[%c0_19, %c0_20], %21 {strides = array<i32>} : memref<8x128xf32, #tpu.memory_space<vmem>>, vector<8x128xf32>,
    } else {
    }
    return
  }
  func.func @transform_0(%arg0: i32, %arg1: i32) -> (i32, i32) {
    %c0_i32 = arith.constant 0 : i32
    return %arg0, %arg1 : i32, i32
  }
  func.func @transform_1(%arg0: i32, %arg1: i32) -> (i32, i32) {
    %c0_i32 = arith.constant 0 : i32
    %c0_i32_0 = arith.constant 0 : i32
    return %arg1, %c0_i32 : i32, i32
  }
  func.func @transform_2(%arg0: i32, %arg1: i32) -> (i32, i32) {
    %c0_i32 = arith.constant 0 : i32
    %c0_i32_0 = arith.constant 0 : i32
    %c0_i32_1 = arith.constant 0 : i32
    return %c0_i32, %c0_i32_0 : i32, i32
  }
  func.func @transform_3(%arg0: i32, %arg1: i32) -> (i32, i32) {
    %c0_i32 = arith.constant 0 : i32
    %c0_i32_0 = arith.constant 0 : i32
    %c0_i32_1 = arith.constant 0 : i32
    return %c0_i32, %c0_i32_0 : i32, i32
  }
  func.func @transform_4(%arg0: i32, %arg1: i32) -> (i32, i32) {
    %c0_i32 = arith.constant 0 : i32
    %c0_i32_0 = arith.constant 0 : i32
    %c0_i32_1 = arith.constant 0 : i32
    return %c0_i32, %c0_i32_0 : i32, i32
  }
  func.func @transform_5(%arg0: i32, %arg1: i32) -> (i32, i32) {
    %c0_i32 = arith.constant 0 : i32
    %c0_i32_0 = arith.constant 0 : i32
    return %arg0, %c0_i32 : i32, i32
  }
  func.func @transform_6(%arg0: i32, %arg1: i32) -> (i32, i32) {
    %c0_i32 = arith.constant 0 : i32
    %c0_i32_0 = arith.constant 0 : i32
    return %arg0, %c0_i32 : i32, i32
  }
}

</mosaic_0001>

<llo_original>
// kernel: tpu_custom_call.1
$region0: #{tpu_custom_call.1}
  #allocation0 [shape = 'u32[]', space=smem, size = 0x4, offset = 0x4, fixed_abs, tag = 'smem constant byte address 0x4 - core index']
  #allocation1 [shape = 'u32[144,128]{1,0:T(1,128)}', space=vmem, size = 0x12000, scoped, tag = 'internal scratch']
  #allocation2 [shape = 'f32[8,128]{1,0:T(8,128)}', space=vmem, size = 0x1000, scoped, tag = 'scratch operand']
  %s0 = inlined_call_operand.hbm [shape: bf16[8,1024], index: 0, kind: input, shape index: {}]
  %s1 = inlined_call_operand.hbm [shape: bf16[1024,128], index: 1, kind: input, shape index: {}]
  %s2 = inlined_call_operand.vmem [shape: f32[1,128], index: 2, kind: input, shape index: {}]
  %s3 = inlined_call_operand.hbm [shape: bf16[128,128], index: 3, kind: input, shape index: {}]
  %s4 = inlined_call_operand.vmem [shape: f32[1,128], index: 4, kind: input, shape index: {}]
  %s5 = inlined_call_operand.hbm [shape: f32[8,128], index: 5, kind: output, shape index: {0}]
  %s6 = inlined_call_operand.hbm [shape: f32[8,128], index: 6, kind: output, shape index: {1}]
  %7 = xla_tuple %s5, %s6
  %s8 = sld [smem:[#allocation0]]
  $region81: #{tpu_custom_call.1} parent=0
    _
  %s10 = ssub.s32 1, %s8
  %s11 = scalar_select 0, %s10, %s8
  $region1: #{tpu_custom_call.1} parent=0
    #allocation3 [shape = 'u8[16384]{0}', space=vmem, size = 0x4000, scoped, tag = 'input window, operand 0']
    #allocation4 [shape = 's32[2]{0}', space=sflag, size = 0x8, scoped, tag = 'scoped memory for tpu_custom_call.1']
    #allocation5 [shape = 's32[2]{0}', space=sflag, size = 0x8, scoped, tag = 'scoped memory for tpu_custom_call.1']
    #allocation6 [shape = 'u8[262144]{0}', space=vmem, size = 0x40000, scoped, tag = 'input window, operand 1']
    #allocation7 [shape = 's32[2]{0}', space=sflag, size = 0x8, scoped, tag = 'scoped memory for tpu_custom_call.1']
    #allocation8 [shape = 'u8[32768]{0}', space=vmem, size = 0x8000, scoped, tag = 'input window, operand 3, single buffered']
    #allocation9 [shape = 'u8[4096]{0}', space=vmem, size = 0x1000, scoped, tag = 'output window, operand 0, single buffered']
    #allocation10 [shape = 'u8[4096]{0}', space=vmem, size = 0x1000, scoped, tag = 'output window, operand 1, single buffered']
    #allocation11 [shape = 's32[1]{0}', space=sflag, size = 0x4, scoped, tag = 'scoped memory for tpu_custom_call.1']
    %12 = vsyncpa [#allocation4], 0
    %s13 = scalar_lea.sflag [#allocation4], 1
    %14 = vsyncpa %s13, 0
    %15 = vsyncpa [#allocation7], 0
    %s16 = scalar_lea.sflag [#allocation7], 1
    %17 = vsyncpa %s16, 0
    %18 = vsyncpa [#allocation5], 0
    %19 = vsyncpa [#allocation11], 0
    loop: start=0, step=1, limit=4
    $region2: #{tpu_custom_call.1} parent=1 // loop_pre_header
      _
    $region3: #{tpu_custom_call.1} parent=1 // loop_header
      %s21 = sphi 0, %s25
      %p22 = scmp.ge.s32.totalorder %s21, 4
      %s28 = sphi 0, %s40
      %s29 = sphi 0, %s36
      %s30 = sphi 0, %s28
      %s31 = sphi 0, %s29
      %s32 = sphi 0, %s30
      %s33 = sphi 0, %s31
      %s45 = sphi 0, %s47
      %s48 = sphi 0, %s45
      %s49 = sphi 0, %s48
      %s65 = sphi 0, %s49
      %s71 = sphi 0, %s73
      %s74 = sphi 0, %s71
      %s75 = sphi 0, %s74
      %s91 = sphi 0, %s75
      %s95 = sphi 0, %s95
      %s97 = sphi 0, %s95
      %s98 = sphi 0, %s97
      %s112 = sphi 0, %s98
      %s116 = sphi 0, %s116
      %s118 = sphi 0, %s116
      %s119 = sphi 0, %s118
      %s133 = sphi 0, %s119
      %s137 = sphi 0, %s137
      %s139 = sphi 0, %s137
      %s140 = sphi 0, %s139
      %s154 = sphi 0, %s140
      %s160 = sphi 0, %s162
      %s163 = sphi 0, %s160
      %s164 = sphi 0, %s163
      %s180 = sphi 0, %s164
      %s186 = sphi 0, %s188
      %s189 = sphi 0, %s186
      %s190 = sphi 0, %s189
      %s206 = sphi 0, %s190
    $region4: #{tpu_custom_call.1} parent=1 // loop_header_branch
      %24 = sbr.rel (%p22) target = $region8
    $region5: #{tpu_custom_call.1} parent=1 // loop_body
      %s26 = ssub.s32 %s21, 1
      %s27 = ssub.s32 %s21, 2
      %s34 = sadd.s32 1, %s29
      %p35 = scmp.ge.s32.totalorder %s34, 2
      %s36 = scalar_select %p35, 0, %s34
      %s37 = sadd.s32 1, %s28
      %s38 = scalar_select %p35, %s37, %s28
      %p39 = scmp.ge.s32.totalorder %s38, 1
      %s40 = scalar_select %p39, 0, %s38
      %s41 = ssub.s32 %s28, %s40
      %s42 = ssub.s32 %s29, %s36
      %s43 = sor.u32 %s41, %s42
      %p44 = scmp.eq.s32.totalorder %s43, 0
      %s46 = sadd.s32 %s45, 1
      %s47 = scalar_select %p44, %s45, %s46
      %p50 = pneg %p44
      %p51 = scmp.eq.s32.totalorder %s21, 1
      %p52 = por %p50, %p51
      %p53 = scmp.ne.s32.totalorder %s45, %s48
      %p54 = scmp.eq.s32.totalorder %s21, 0
      %p55 = por %p53, %p54
      %p56 = scmp.ne.s32.totalorder %s45, %s48
      %p57 = scmp.eq.s32.totalorder %s26, 1
      %p58 = por %p56, %p57
      %p59 = scmp.ne.s32.totalorder %s48, %s49
      %p60 = scmp.eq.s32.totalorder %s26, 0
      %p61 = por %p59, %p60
      %p62 = scmp.ne.s32.totalorder %s48, %s49
      %p63 = scmp.eq.s32.totalorder %s27, 1
      %p64 = por %p62, %p63
      %p66 = scmp.ne.s32.totalorder %s49, %s65
      %p67 = scmp.eq.s32.totalorder %s27, 0
      %p68 = por %p66, %p67
      %s69 = ssub.s32 %s29, %s36
      %p70 = scmp.eq.s32.totalorder %s69, 0
      %s72 = sadd.s32 %s71, 1
      %s73 = scalar_select %p70, %s71, %s72
      %p76 = pneg %p70
      %p77 = scmp.eq.s32.totalorder %s21, 1
      %p78 = por %p76, %p77
      %p79 = scmp.ne.s32.totalorder %s71, %s74
      %p80 = scmp.eq.s32.totalorder %s21, 0
      %p81 = por %p79, %p80
      %p82 = scmp.ne.s32.totalorder %s71, %s74
      %p83 = scmp.eq.s32.totalorder %s26, 1
      %p84 = por %p82, %p83
      %p85 = scmp.ne.s32.totalorder %s74, %s75
      %p86 = scmp.eq.s32.totalorder %s26, 0
      %p87 = por %p85, %p86
      %p88 = scmp.ne.s32.totalorder %s74, %s75
      %p89 = scmp.eq.s32.totalorder %s27, 1
      %p90 = por %p88, %p89
      %p92 = scmp.ne.s32.totalorder %s75, %s91
      %p93 = scmp.eq.s32.totalorder %s27, 0
      %p94 = por %p92, %p93
      %s96 = sadd.s32 %s95, 1
      %p99 = scmp.eq.s32.totalorder %s21, 1
      %p100 = scmp.ne.s32.totalorder %s95, %s97
      %p101 = scmp.eq.s32.totalorder %s21, 0
      %p102 = por %p100, %p101
      %p103 = scmp.ne.s32.totalorder %s95, %s97
      %p104 = scmp.eq.s32.totalorder %s26, 1
      %p105 = por %p103, %p104
      %p106 = scmp.ne.s32.totalorder %s97, %s98
      %p107 = scmp.eq.s32.totalorder %s26, 0
      %p108 = por %p106, %p107
      %p109 = scmp.ne.s32.totalorder %s97, %s98
      %p110 = scmp.eq.s32.totalorder %s27, 1
      %p111 = por %p109, %p110
      %p113 = scmp.ne.s32.totalorder %s98, %s112
      %p114 = scmp.eq.s32.totalorder %s27, 0
      %p115 = por %p113, %p114
      %s117 = sadd.s32 %s116, 1
      %p120 = scmp.eq.s32.totalorder %s21, 1
      %p121 = scmp.ne.s32.totalorder %s116, %s118
      %p122 = scmp.eq.s32.totalorder %s21, 0
      %p123 = por %p121, %p122
      %p124 = scmp.ne.s32.totalorder %s116, %s118
      %p125 = scmp.eq.s32.totalorder %s26, 1
      %p126 = por %p124, %p125
      %p127 = scmp.ne.s32.totalorder %s118, %s119
      %p128 = scmp.eq.s32.totalorder %s26, 0
      %p129 = por %p127, %p128
      %p130 = scmp.ne.s32.totalorder %s118, %s119
      %p131 = scmp.eq.s32.totalorder %s27, 1
      %p132 = por %p130, %p131
      %p134 = scmp.ne.s32.totalorder %s119, %s133
      %p135 = scmp.eq.s32.totalorder %s27, 0
      %p136 = por %p134, %p135
      %s138 = sadd.s32 %s137, 1
      %p141 = scmp.eq.s32.totalorder %s21, 1
      %p142 = scmp.ne.s32.totalorder %s137, %s139
      %p143 = scmp.eq.s32.totalorder %s21, 0
      %p144 = por %p142, %p143
      %p145 = scmp.ne.s32.totalorder %s137, %s139
      %p146 = scmp.eq.s32.totalorder %s26, 1
      %p147 = por %p145, %p146
      %p148 = scmp.ne.s32.totalorder %s139, %s140
      %p149 = scmp.eq.s32.totalorder %s26, 0
      %p150 = por %p148, %p149
      %p151 = scmp.ne.s32.totalorder %s139, %s140
      %p152 = scmp.eq.s32.totalorder %s27, 1
      %p153 = por %p151, %p152
      %p155 = scmp.ne.s32.totalorder %s140, %s154
      %p156 = scmp.eq.s32.totalorder %s27, 0
      %p157 = por %p155, %p156
      %s158 = ssub.s32 %s28, %s40
      %p159 = scmp.eq.s32.totalorder %s158, 0
      %s161 = sadd.s32 %s160, 1
      %s162 = scalar_select %p159, %s160, %s161
      %p165 = pneg %p159
      %p166 = scmp.eq.s32.totalorder %s21, 1
      %p167 = por %p165, %p166
      %p168 = scmp.ne.s32.totalorder %s160, %s163
      %p169 = scmp.eq.s32.totalorder %s21, 0
      %p170 = por %p168, %p169
      %p171 = scmp.ne.s32.totalorder %s160, %s163
      %p172 = scmp.eq.s32.totalorder %s26, 1
      %p173 = por %p171, %p172
      %p174 = scmp.ne.s32.totalorder %s163, %s164
      %p175 = scmp.eq.s32.totalorder %s26, 0
      %p176 = por %p174, %p175
      %p177 = scmp.ne.s32.totalorder %s163, %s164
      %p178 = scmp.eq.s32.totalorder %s27, 1
      %p179 = por %p177, %p178
      %p181 = scmp.ne.s32.totalorder %s164, %s180
      %p182 = scmp.eq.s32.totalorder %s27, 0
      %p183 = por %p181, %p182
      %s184 = ssub.s32 %s28, %s40
      %p185 = scmp.eq.s32.totalorder %s184, 0
      %s187 = sadd.s32 %s186, 1
      %s188 = scalar_select %p185, %s186, %s187
      %p191 = pneg %p185
      %p192 = scmp.eq.s32.totalorder %s21, 1
      %p193 = por %p191, %p192
      %p194 = scmp.ne.s32.totalorder %s186, %s189
      %p195 = scmp.eq.s32.totalorder %s21, 0
      %p196 = por %p194, %p195
      %p197 = scmp.ne.s32.totalorder %s186, %s189
      %p198 = scmp.eq.s32.totalorder %s26, 1
      %p199 = por %p197, %p198
      %p200 = scmp.ne.s32.totalorder %s189, %s190
      %p201 = scmp.eq.s32.totalorder %s26, 0
      %p202 = por %p200, %p201
      %p203 = scmp.ne.s32.totalorder %s189, %s190
      %p204 = scmp.eq.s32.totalorder %s27, 1
      %p205 = por %p203, %p204
      %p207 = scmp.ne.s32.totalorder %s190, %s206
      %p208 = scmp.eq.s32.totalorder %s27, 0
      %p209 = por %p207, %p208
      %p210 = scmp.le.s32.totalorder 1, %s21
      %p211 = scmp.lt.s32.totalorder %s21, 3
      %p212 = pnand %p210, %p211
      %p213 = pneg %p212
      // Predicated region
      $region9: #{tpu_custom_call.1} parent=5 // pred_check
        _
      $region10: #{tpu_custom_call.1} parent=5 // pred_check_branch
        %215 = sbr.rel (%p212) target = $region12
      $region11: #{tpu_custom_call.1} parent=5 // pred_region
        %s216 = ssub.s32 %s21, 1
        // Predicated region
        $region13: #{tpu_custom_call.1} parent=11 // pred_check
          %p217 = pneg %p108
        $region14: #{tpu_custom_call.1} parent=11 // pred_check_branch
          %219 = sbr.rel (%p217) target = $region16
        $region15: #{tpu_custom_call.1} parent=11 // pred_region
          _
        $region16: #{tpu_custom_call.1} parent=11 // pred_fallthru
          _
        // Predicated region
        $region17: #{tpu_custom_call.1} parent=11 // pred_check
          %p220 = pneg %p129
        $region18: #{tpu_custom_call.1} parent=11 // pred_check_branch
          %222 = sbr.rel (%p220) target = $region20
        $region19: #{tpu_custom_call.1} parent=11 // pred_region
          %s224 = ssub.s32 1024, 1024
          %225 = vsyncadd [#allocation7], %s224
          %s226 = sshll.u32 [#allocation8], 4
          %s227 = int_to_ptr.vmem [resolvable:$true] %s226
          %232 = dma.hbm_to_vmem [thread:$0]  %s3, 1024, %s227, [#allocation7], 64, 64, 4
        $region20: #{tpu_custom_call.1} parent=11 // pred_fallthru
          _
        // Predicated region
        $region21: #{tpu_custom_call.1} parent=11 // pred_check
          %p233 = pneg %p150
        $region22: #{tpu_custom_call.1} parent=11 // pred_check_branch
          %235 = sbr.rel (%p233) target = $region24
        $region23: #{tpu_custom_call.1} parent=11 // pred_region
          _
        $region24: #{tpu_custom_call.1} parent=11 // pred_fallthru
          _
      $region12: #{tpu_custom_call.1} parent=5 // pred_fallthru
        _
      %p236 = scmp.lt.s32.totalorder %s21, 2
      // Predicated region
      $region25: #{tpu_custom_call.1} parent=5 // pred_check
        %p237 = pneg %p236
      $region26: #{tpu_custom_call.1} parent=5 // pred_check_branch
        %239 = sbr.rel (%p237) target = $region28
      $region27: #{tpu_custom_call.1} parent=5 // pred_region
        // Predicated region
        $region29: #{tpu_custom_call.1} parent=27 // pred_check
          %p240 = pneg %p55
        $region30: #{tpu_custom_call.1} parent=27 // pred_check_branch
          %242 = sbr.rel (%p240) target = $region32
        $region31: #{tpu_custom_call.1} parent=27 // pred_region
          %s243 = sand.u32 %s45, 1
          %s244 = scalar_lea.sflag [#allocation4], %s243
          %s245 = sand.u32 %s45, 1
          %s246 = smul.addr %s245, 16
          %s247 = scalar_lea.vmem [#allocation3], %s246
          %s248 = smul.u32 4, %s29
          %s250 = ssub.s32 256, 256
          %251 = vsyncadd %s244, %s250
          %s252 = smul.addr %s28, 8
          %s253 = sadd.s32 %s248, %s252
          %s254 = smul.addr %s253, 64
          %s255 = scalar_lea.hbm %s0, %s254
          %s257 = sshll.u32 %s247, 4
          %s258 = int_to_ptr.vmem [resolvable:$true] %s257
          %260 = dma.hbm_to_vmem [thread:$0]  %s255, 256, %s258, %s244
        $region32: #{tpu_custom_call.1} parent=27 // pred_fallthru
          _
        // Predicated region
        $region33: #{tpu_custom_call.1} parent=27 // pred_check
          %p261 = pneg %p81
        $region34: #{tpu_custom_call.1} parent=27 // pred_check_branch
          %263 = sbr.rel (%p261) target = $region36
        $region35: #{tpu_custom_call.1} parent=27 // pred_region
          %s264 = sand.u32 %s21, 1
          %s265 = scalar_lea.sflag [#allocation7], %s264
          %s266 = sand.u32 %s71, 1
          %s267 = smul.addr %s266, 256
          %s268 = scalar_lea.vmem [#allocation6], %s267
          %s269 = smul.u32 64, %s29
          %s271 = ssub.s32 4096, 4096
          %272 = vsyncadd %s265, %s271
          %s273 = smul.addr %s269, 64
          %s274 = scalar_lea.hbm %s1, %s273
          %s275 = sshll.u32 %s268, 4
          %s276 = int_to_ptr.vmem [resolvable:$true] %s275
          %281 = dma.hbm_to_vmem [thread:$0]  %s274, 4096, %s276, %s265, 64, 64, 4
        $region36: #{tpu_custom_call.1} parent=27 // pred_fallthru
          _
      $region28: #{tpu_custom_call.1} parent=5 // pred_fallthru
        _
      %p282 = scmp.le.s32.totalorder 1, %s21
      %p283 = scmp.lt.s32.totalorder %s21, 3
      %p284 = pnand %p282, %p283
      %p285 = pneg %p284
      // Predicated region
      $region37: #{tpu_custom_call.1} parent=5 // pred_check
        _
      $region38: #{tpu_custom_call.1} parent=5 // pred_check_branch
        %287 = sbr.rel (%p284) target = $region40
      $region39: #{tpu_custom_call.1} parent=5 // pred_region
        %s288 = ssub.s32 %s21, 1
        %s289 = sand.u32 %s48, 1
        %s290 = scalar_lea.sflag [#allocation4], %s289
        %s291 = sand.u32 %s48, 1
        %s292 = smul.addr %s291, 16
        %s293 = scalar_lea.vmem [#allocation3], %s292
        // Predicated region
        $region41: #{tpu_custom_call.1} parent=39 // pred_check
          %p294 = pneg %p61
        $region42: #{tpu_custom_call.1} parent=39 // pred_check_branch
          %296 = sbr.rel (%p294) target = $region44
        $region43: #{tpu_custom_call.1} parent=39 // pred_region
          %297 = dma.done %s290, 256
        $region44: #{tpu_custom_call.1} parent=39 // pred_fallthru
          _
        %s298 = sand.u32 %s26, 1
        %s299 = scalar_lea.sflag [#allocation7], %s298
        %s300 = sand.u32 %s74, 1
        %s301 = smul.addr %s300, 256
        %s302 = scalar_lea.vmem [#allocation6], %s301
        // Predicated region
        $region45: #{tpu_custom_call.1} parent=39 // pred_check
          %p303 = pneg %p87
        $region46: #{tpu_custom_call.1} parent=39 // pred_check_branch
          %305 = sbr.rel (%p303) target = $region48
        $region47: #{tpu_custom_call.1} parent=39 // pred_region
          %306 = dma.done %s299, 4096
        $region48: #{tpu_custom_call.1} parent=39 // pred_fallthru
          _
        // Predicated region
        $region49: #{tpu_custom_call.1} parent=39 // pred_check
          %p307 = pneg %p129
        $region50: #{tpu_custom_call.1} parent=39 // pred_check_branch
          %309 = sbr.rel (%p307) target = $region52
        $region51: #{tpu_custom_call.1} parent=39 // pred_region
          %310 = dma.done [#allocation7], 1024
        $region52: #{tpu_custom_call.1} parent=39 // pred_fallthru
          _
        %s311 = sand.u32 %s48, 1
        %s312 = scalar_lea.sflag [#allocation4], %s311
        %s313 = sand.u32 %s48, 1
        %s314 = smul.addr %s313, 16
        %s315 = scalar_lea.vmem [#allocation3], %s314
        %p316 = pneg %p61
        %p317 = pneg %p58
        %s318 = sand.u32 %s26, 1
        %s319 = scalar_lea.sflag [#allocation7], %s318
        %s320 = sand.u32 %s74, 1
        %s321 = smul.addr %s320, 256
        %s322 = scalar_lea.vmem [#allocation6], %s321
        %p323 = pneg %p87
        %p324 = pneg %p84
        %p325 = pneg %p108
        %p326 = pneg %p105
        %p327 = pneg %p129
        %p328 = pneg %p126
        %p329 = pneg %p150
        %p330 = pneg %p147
        %p331 = pneg %p176
        %p332 = pneg %p173
        %p333 = pneg %p202
        %p334 = pneg %p199
        %s335 = smul.u32 4, %s31
        %s336 = smul.u32 64, %s31
        %p338 = scmp.eq.s32.totalorder %s31, 0
        // Predicated region
        $region53: #{tpu_custom_call.1} parent=39 // pred_check
          %p339 = pneg %p338
        $region54: #{tpu_custom_call.1} parent=39 // pred_check_branch
          %341 = sbr.rel (%p339) target = $region56
        $region55: #{tpu_custom_call.1} parent=39 // pred_region
          %v342 = vld [vmem:[%s2] sm:$0x1]
          %v344 = vlaneseq
          %v345 = vshrl.u32 %v344, 7
          %v346 = vsub.s32 0, %v345
          %v347 = vrot.slane %v342, %v346
          %349 = vst [vmem:[#allocation2] sm:$0xff] %v347
        $region56: #{tpu_custom_call.1} parent=39 // pred_fallthru
          _
        %v350 = vld [vmem:[#allocation2] sm:$0xff]
        %v351 = vld [vmem:[%s293] sm:$0xff]
        %v352 = vld [vmem:[%s293 + $0x8] sm:$0xff]
        %v353 = vld [vmem:[%s302] sm:$0xf]
        %v354 = vld [vmem:[%s302 + $0x4] sm:$0xf]
        %v355 = vld [vmem:[%s302 + $0x8] sm:$0xf]
        %v356 = vld [vmem:[%s302 + $0xc] sm:$0xf]
        %v357 = vld [vmem:[%s302 + $0x10] sm:$0xf]
        %v358 = vld [vmem:[%s302 + $0x14] sm:$0xf]
        %v359 = vld [vmem:[%s302 + $0x18] sm:$0xf]
        %v360 = vld [vmem:[%s302 + $0x1c] sm:$0xf]
        %v361 = vld [vmem:[%s302 + $0x20] sm:$0xf]
        %v362 = vld [vmem:[%s302 + $0x24] sm:$0xf]
        %v363 = vld [vmem:[%s302 + $0x28] sm:$0xf]
        %v364 = vld [vmem:[%s302 + $0x2c] sm:$0xf]
        %v365 = vld [vmem:[%s302 + $0x30] sm:$0xf]
        %v366 = vld [vmem:[%s302 + $0x34] sm:$0xf]
        %v367 = vld [vmem:[%s302 + $0x38] sm:$0xf]
        %v368 = vld [vmem:[%s302 + $0x3c] sm:$0xf]
        %v369 = vld [vmem:[%s302 + $0x40] sm:$0xf]
        %v370 = vld [vmem:[%s302 + $0x44] sm:$0xf]
        %v371 = vld [vmem:[%s302 + $0x48] sm:$0xf]
        %v372 = vld [vmem:[%s302 + $0x4c] sm:$0xf]
        %v373 = vld [vmem:[%s302 + $0x50] sm:$0xf]
        %v374 = vld [vmem:[%s302 + $0x54] sm:$0xf]
        %v375 = vld [vmem:[%s302 + $0x58] sm:$0xf]
        %v376 = vld [vmem:[%s302 + $0x5c] sm:$0xf]
        %v377 = vld [vmem:[%s302 + $0x60] sm:$0xf]
        %v378 = vld [vmem:[%s302 + $0x64] sm:$0xf]
        %v379 = vld [vmem:[%s302 + $0x68] sm:$0xf]
        %v380 = vld [vmem:[%s302 + $0x6c] sm:$0xf]
        %v381 = vld [vmem:[%s302 + $0x70] sm:$0xf]
        %v382 = vld [vmem:[%s302 + $0x74] sm:$0xf]
        %v383 = vld [vmem:[%s302 + $0x78] sm:$0xf]
        %v384 = vld [vmem:[%s302 + $0x7c] sm:$0xf]
        %v385 = vld [vmem:[%s302 + $0x80] sm:$0xf]
        %v386 = vld [vmem:[%s302 + $0x84] sm:$0xf]
        %v387 = vld [vmem:[%s302 + $0x88] sm:$0xf]
        %v388 = vld [vmem:[%s302 + $0x8c] sm:$0xf]
        %v389 = vld [vmem:[%s302 + $0x90] sm:$0xf]
        %v390 = vld [vmem:[%s302 + $0x94] sm:$0xf]
        %v391 = vld [vmem:[%s302 + $0x98] sm:$0xf]
        %v392 = vld [vmem:[%s302 + $0x9c] sm:$0xf]
        %v393 = vld [vmem:[%s302 + $0xa0] sm:$0xf]
        %v394 = vld [vmem:[%s302 + $0xa4] sm:$0xf]
        %v395 = vld [vmem:[%s302 + $0xa8] sm:$0xf]
        %v396 = vld [vmem:[%s302 + $0xac] sm:$0xf]
        %v397 = vld [vmem:[%s302 + $0xb0] sm:$0xf]
        %v398 = vld [vmem:[%s302 + $0xb4] sm:$0xf]
        %v399 = vld [vmem:[%s302 + $0xb8] sm:$0xf]
        %v400 = vld [vmem:[%s302 + $0xbc] sm:$0xf]
        %v401 = vld [vmem:[%s302 + $0xc0] sm:$0xf]
        %v402 = vld [vmem:[%s302 + $0xc4] sm:$0xf]
        %v403 = vld [vmem:[%s302 + $0xc8] sm:$0xf]
        %v404 = vld [vmem:[%s302 + $0xcc] sm:$0xf]
        %v405 = vld [vmem:[%s302 + $0xd0] sm:$0xf]
        %v406 = vld [vmem:[%s302 + $0xd4] sm:$0xf]
        %v407 = vld [vmem:[%s302 + $0xd8] sm:$0xf]
        %v408 = vld [vmem:[%s302 + $0xdc] sm:$0xf]
        %v409 = vld [vmem:[%s302 + $0xe0] sm:$0xf]
        %v410 = vld [vmem:[%s302 + $0xe4] sm:$0xf]
        %v411 = vld [vmem:[%s302 + $0xe8] sm:$0xf]
        %v412 = vld [vmem:[%s302 + $0xec] sm:$0xf]
        %v413 = vld [vmem:[%s302 + $0xf0] sm:$0xf]
        %v414 = vld [vmem:[%s302 + $0xf4] sm:$0xf]
        %v415 = vld [vmem:[%s302 + $0xf8] sm:$0xf]
        %v416 = vld [vmem:[%s302 + $0xfc] sm:$0xf]
        %v419 = vunpack.c.l.b16 %v351
        %v420 = vunpack.c.h.b16 %v351
        %v421 = vunpack.c.l.b16 %v352
        %v422 = vunpack.c.h.b16 %v352
        %v423 = vpack.c.b16 %v419, %v419
        %v424 = vpack.c.b16 %v420, %v420
        %v425 = vpack.c.b16 %v421, %v421
        %v426 = vpack.c.b16 %v422, %v422
        %v495 = vunpack.c.l.b16 %v353
        %v496 = vunpack.c.l.b16 %v354
        %v497 = vunpack.c.l.b16 %v355
        %v498 = vunpack.c.l.b16 %v356
        %v499 = vunpack.c.l.b16 %v357
        %v500 = vunpack.c.l.b16 %v358
        %v501 = vunpack.c.l.b16 %v359
        %v502 = vunpack.c.l.b16 %v360
        %v503 = vunpack.c.l.b16 %v361
        %v504 = vunpack.c.l.b16 %v362
        %v505 = vunpack.c.l.b16 %v363
        %v506 = vunpack.c.l.b16 %v364
        %v507 = vunpack.c.l.b16 %v365
        %v508 = vunpack.c.l.b16 %v366
        %v509 = vunpack.c.l.b16 %v367
        %v510 = vunpack.c.l.b16 %v368
        %v511 = vunpack.c.l.b16 %v369
        %v512 = vunpack.c.l.b16 %v370
        %v513 = vunpack.c.l.b16 %v371
        %v514 = vunpack.c.l.b16 %v372
        %v515 = vunpack.c.l.b16 %v373
        %v516 = vunpack.c.l.b16 %v374
        %v517 = vunpack.c.l.b16 %v375
        %v518 = vunpack.c.l.b16 %v376
        %v519 = vunpack.c.l.b16 %v377
        %v520 = vunpack.c.l.b16 %v378
        %v521 = vunpack.c.l.b16 %v379
        %v522 = vunpack.c.l.b16 %v380
        %v523 = vunpack.c.l.b16 %v381
        %v524 = vunpack.c.l.b16 %v382
        %v525 = vunpack.c.l.b16 %v383
        %v526 = vunpack.c.l.b16 %v384
        %v527 = vunpack.c.l.b16 %v385
        %v528 = vunpack.c.l.b16 %v386
        %v529 = vunpack.c.l.b16 %v387
        %v530 = vunpack.c.l.b16 %v388
        %v531 = vunpack.c.l.b16 %v389
        %v532 = vunpack.c.l.b16 %v390
        %v533 = vunpack.c.l.b16 %v391
        %v534 = vunpack.c.l.b16 %v392
        %v535 = vunpack.c.l.b16 %v393
        %v536 = vunpack.c.l.b16 %v394
        %v537 = vunpack.c.l.b16 %v395
        %v538 = vunpack.c.l.b16 %v396
        %v539 = vunpack.c.l.b16 %v397
        %v540 = vunpack.c.l.b16 %v398
        %v541 = vunpack.c.l.b16 %v399
        %v542 = vunpack.c.l.b16 %v400
        %v543 = vunpack.c.l.b16 %v401
        %v544 = vunpack.c.l.b16 %v402
        %v545 = vunpack.c.l.b16 %v403
        %v546 = vunpack.c.l.b16 %v404
        %v547 = vunpack.c.l.b16 %v405
        %v548 = vunpack.c.l.b16 %v406
        %v549 = vunpack.c.l.b16 %v407
        %v550 = vunpack.c.l.b16 %v408
        %v551 = vunpack.c.l.b16 %v409
        %v552 = vunpack.c.l.b16 %v410
        %v553 = vunpack.c.l.b16 %v411
        %v554 = vunpack.c.l.b16 %v412
        %v555 = vunpack.c.l.b16 %v413
        %v556 = vunpack.c.l.b16 %v414
        %v557 = vunpack.c.l.b16 %v415
        %v558 = vunpack.c.l.b16 %v416
        %v559 = vpack.c.b16 %v496, %v495
        %v560 = vpack.c.b16 %v498, %v497
        %v561 = vpack.c.b16 %v500, %v499
        %v562 = vpack.c.b16 %v502, %v501
        %v563 = vpack.c.b16 %v504, %v503
        %v564 = vpack.c.b16 %v506, %v505
        %v565 = vpack.c.b16 %v508, %v507
        %v566 = vpack.c.b16 %v510, %v509
        %v567 = vpack.c.b16 %v512, %v511
        %v568 = vpack.c.b16 %v514, %v513
        %v569 = vpack.c.b16 %v516, %v515
        %v570 = vpack.c.b16 %v518, %v517
        %v571 = vpack.c.b16 %v520, %v519
        %v572 = vpack.c.b16 %v522, %v521
        %v573 = vpack.c.b16 %v524, %v523
        %v574 = vpack.c.b16 %v526, %v525
        %v575 = vpack.c.b16 %v528, %v527
        %v576 = vpack.c.b16 %v530, %v529
        %v577 = vpack.c.b16 %v532, %v531
        %v578 = vpack.c.b16 %v534, %v533
        %v579 = vpack.c.b16 %v536, %v535
        %v580 = vpack.c.b16 %v538, %v537
        %v581 = vpack.c.b16 %v540, %v539
        %v582 = vpack.c.b16 %v542, %v541
        %v583 = vpack.c.b16 %v544, %v543
        %v584 = vpack.c.b16 %v546, %v545
        %v585 = vpack.c.b16 %v548, %v547
        %v586 = vpack.c.b16 %v550, %v549
        %v587 = vpack.c.b16 %v552, %v551
        %v588 = vpack.c.b16 %v554, %v553
        %v589 = vpack.c.b16 %v556, %v555
        %v590 = vpack.c.b16 %v558, %v557
        %623 = vmatprep.subr.bf16.mxu0 0
        %624 = vmatpush1.bf16.msra.mxu0 %v559
        %625 = vmatprep.subr.bf16.mxu0 0
        %626 = vmatpush1.bf16.msra.mxu0 %v560
        %627 = vmatprep.subr.bf16.mxu0 0
        %628 = vmatpush1.bf16.msra.mxu0 %v561
        %629 = vmatprep.subr.bf16.mxu0 0
        %630 = vmatpush1.bf16.msra.mxu0 %v562
        %631 = vmatprep.subr.bf16.mxu0 0
        %632 = vmatpush1.bf16.msra.mxu0 %v563
        %633 = vmatprep.subr.bf16.mxu0 0
        %634 = vmatpush1.bf16.msra.mxu0 %v564
        %635 = vmatprep.subr.bf16.mxu0 0
        %636 = vmatpush1.bf16.msra.mxu0 %v565
        %637 = vmatprep.subr.bf16.mxu0 0
        %638 = vmatpush1.bf16.msra.mxu0 %v566
        %639 = vmatprep.subr.bf16.mxu0 0
        %640 = vmatpush1.bf16.msra.mxu0 %v567
        %641 = vmatprep.subr.bf16.mxu0 0
        %642 = vmatpush1.bf16.msra.mxu0 %v568
        %643 = vmatprep.subr.bf16.mxu0 0
        %644 = vmatpush1.bf16.msra.mxu0 %v569
        %645 = vmatprep.subr.bf16.mxu0 0
        %646 = vmatpush1.bf16.msra.mxu0 %v570
        %647 = vmatprep.subr.bf16.mxu0 0
        %648 = vmatpush1.bf16.msra.mxu0 %v571
        %649 = vmatprep.subr.bf16.mxu0 0
        %650 = vmatpush1.bf16.msra.mxu0 %v572
        %651 = vmatprep.subr.bf16.mxu0 0
        %652 = vmatpush1.bf16.msra.mxu0 %v573
        %653 = vmatprep.subr.bf16.mxu0 0
        %654 = vmatpush1.bf16.msra.mxu0 %v574
        %655 = vmatprep.mubr.bf16.mxu0 %v424
        %656 = vmatmul.mubr.bf16.gmra.mrb[0].mxu0 %v423
        %v657 = vpop.f32.mrb[0].mxu0
        %v658 = vadd.f32 0.0, %v657
        %v659 = vpop.f32.mrb[0].mxu0
        %v660 = vpop.f32.mrb[0].mxu0
        %v661 = vpop.f32.mrb[0].mxu0
        %662 = vdwg.mxu0
        %663 = vmatprep.subr.bf16.mxu0 0
        %664 = vmatpush1.bf16.msra.mxu0 %v575
        %665 = vmatprep.subr.bf16.mxu0 0
        %666 = vmatpush1.bf16.msra.mxu0 %v576
        %667 = vmatprep.subr.bf16.mxu0 0
        %668 = vmatpush1.bf16.msra.mxu0 %v577
        %669 = vmatprep.subr.bf16.mxu0 0
        %670 = vmatpush1.bf16.msra.mxu0 %v578
        %671 = vmatprep.subr.bf16.mxu0 0
        %672 = vmatpush1.bf16.msra.mxu0 %v579
        %673 = vmatprep.subr.bf16.mxu0 0
        %674 = vmatpush1.bf16.msra.mxu0 %v580
        %675 = vmatprep.subr.bf16.mxu0 0
        %676 = vmatpush1.bf16.msra.mxu0 %v581
        %677 = vmatprep.subr.bf16.mxu0 0
        %678 = vmatpush1.bf16.msra.mxu0 %v582
        %679 = vmatprep.subr.bf16.mxu0 0
        %680 = vmatpush1.bf16.msra.mxu0 %v583
        %681 = vmatprep.subr.bf16.mxu0 0
        %682 = vmatpush1.bf16.msra.mxu0 %v584
        %683 = vmatprep.subr.bf16.mxu0 0
        %684 = vmatpush1.bf16.msra.mxu0 %v585
        %685 = vmatprep.subr.bf16.mxu0 0
        %686 = vmatpush1.bf16.msra.mxu0 %v586
        %687 = vmatprep.subr.bf16.mxu0 0
        %688 = vmatpush1.bf16.msra.mxu0 %v587
        %689 = vmatprep.subr.bf16.mxu0 0
        %690 = vmatpush1.bf16.msra.mxu0 %v588
        %691 = vmatprep.subr.bf16.mxu0 0
        %692 = vmatpush1.bf16.msra.mxu0 %v589
        %693 = vmatprep.subr.bf16.mxu0 0
        %694 = vmatpush1.bf16.msra.mxu0 %v590
        %695 = vmatprep.mubr.bf16.mxu0 %v426
        %696 = vmatmul.mubr.bf16.gmra.mrb[0].mxu0 %v425
        %v697 = vpop.f32.mrb[0].mxu0
        %v698 = vadd.f32 %v658, %v697
        %v699 = vpop.f32.mrb[0].mxu0
        %v700 = vpop.f32.mrb[0].mxu0
        %v701 = vpop.f32.mrb[0].mxu0
        %702 = vdwg.mxu0
        %v703 = vadd.f32 %v350, %v698
        %704 = vst [vmem:[#allocation2] sm:$0xff] %v703
        %p705 = scmp.eq.s32.totalorder %s31, 1
        // Predicated region
        $region57: #{tpu_custom_call.1} parent=39 // pred_check
          %p706 = pneg %p705
        $region58: #{tpu_custom_call.1} parent=39 // pred_check_branch
          %708 = sbr.rel (%p706) target = $region60
        $region59: #{tpu_custom_call.1} parent=39 // pred_region
          %v709 = vld [vmem:[#allocation2] sm:$0xff]
          %710 = vst [vmem:[#allocation10] sm:$0xff] %v709
          %v711 = vmax.f32 %v709, 0.0
          %v712 = vpack.c.bf16 %v711, %v711
          %v713 = vld [vmem:[#allocation8] sm:$0xf]
          %v714 = vld [vmem:[#allocation8 + $0x4] sm:$0xf]
          %v715 = vld [vmem:[#allocation8 + $0x8] sm:$0xf]
          %v716 = vld [vmem:[#allocation8 + $0xc] sm:$0xf]
          %v717 = vld [vmem:[#allocation8 + $0x10] sm:$0xf]
          %v718 = vld [vmem:[#allocation8 + $0x14] sm:$0xf]
          %v719 = vld [vmem:[#allocation8 + $0x18] sm:$0xf]
          %v720 = vld [vmem:[#allocation8 + $0x1c] sm:$0xf]
          %v721 = vld [vmem:[#allocation8 + $0x20] sm:$0xf]
          %v722 = vld [vmem:[#allocation8 + $0x24] sm:$0xf]
          %v723 = vld [vmem:[#allocation8 + $0x28] sm:$0xf]
          %v724 = vld [vmem:[#allocation8 + $0x2c] sm:$0xf]
          %v725 = vld [vmem:[#allocation8 + $0x30] sm:$0xf]
          %v726 = vld [vmem:[#allocation8 + $0x34] sm:$0xf]
          %v727 = vld [vmem:[#allocation8 + $0x38] sm:$0xf]
          %v728 = vld [vmem:[#allocation8 + $0x3c] sm:$0xf]
          %v729 = vld [vmem:[%s4] sm:$0x1]
          %v731 = vlaneseq
          %v732 = vshrl.u32 %v731, 7
          %v733 = vsub.s32 0, %v732
          %v734 = vrot.slane %v729, %v733
          %v752 = vunpack.c.l.b16 %v713
          %v753 = vunpack.c.l.b16 %v714
          %v754 = vunpack.c.l.b16 %v715
          %v755 = vunpack.c.l.b16 %v716
          %v756 = vunpack.c.l.b16 %v717
          %v757 = vunpack.c.l.b16 %v718
          %v758 = vunpack.c.l.b16 %v719
          %v759 = vunpack.c.l.b16 %v720
          %v760 = vunpack.c.l.b16 %v721
          %v761 = vunpack.c.l.b16 %v722
          %v762 = vunpack.c.l.b16 %v723
          %v763 = vunpack.c.l.b16 %v724
          %v764 = vunpack.c.l.b16 %v725
          %v765 = vunpack.c.l.b16 %v726
          %v766 = vunpack.c.l.b16 %v727
          %v767 = vunpack.c.l.b16 %v728
          %v768 = vpack.c.b16 %v753, %v752
          %v769 = vpack.c.b16 %v755, %v754
          %v770 = vpack.c.b16 %v757, %v756
          %v771 = vpack.c.b16 %v759, %v758
          %v772 = vpack.c.b16 %v761, %v760
          %v773 = vpack.c.b16 %v763, %v762
          %v774 = vpack.c.b16 %v765, %v764
          %v775 = vpack.c.b16 %v767, %v766
          %784 = vmatprep.subr.bf16.mxu0 0
          %785 = vmatpush1.bf16.msra.mxu0 %v768
          %786 = vmatprep.subr.bf16.mxu0 0
          %787 = vmatpush1.bf16.msra.mxu0 %v769
          %788 = vmatprep.subr.bf16.mxu0 0
          %789 = vmatpush1.bf16.msra.mxu0 %v770
          %790 = vmatprep.subr.bf16.mxu0 0
          %791 = vmatpush1.bf16.msra.mxu0 %v771
          %792 = vmatprep.subr.bf16.mxu0 0
          %793 = vmatpush1.bf16.msra.mxu0 %v772
          %794 = vmatprep.subr.bf16.mxu0 0
          %795 = vmatpush1.bf16.msra.mxu0 %v773
          %796 = vmatprep.subr.bf16.mxu0 0
          %797 = vmatpush1.bf16.msra.mxu0 %v774
          %798 = vmatprep.subr.bf16.mxu0 0
          %799 = vmatpush1.bf16.msra.mxu0 %v775
          %800 = vmatprep.subr.bf16.mxu0 0
          %801 = vmatpush1.bf16.msra.mxu0 0
          %802 = vmatprep.subr.bf16.mxu0 0
          %803 = vmatpush1.bf16.msra.mxu0 0
          %804 = vmatprep.subr.bf16.mxu0 0
          %805 = vmatpush1.bf16.msra.mxu0 0
          %806 = vmatprep.subr.bf16.mxu0 0
          %807 = vmatpush1.bf16.msra.mxu0 0
          %808 = vmatprep.subr.bf16.mxu0 0
          %809 = vmatpush1.bf16.msra.mxu0 0
          %810 = vmatprep.subr.bf16.mxu0 0
          %811 = vmatpush1.bf16.msra.mxu0 0
          %812 = vmatprep.subr.bf16.mxu0 0
          %813 = vmatpush1.bf16.msra.mxu0 0
          %814 = vmatprep.subr.bf16.mxu0 0
          %815 = vmatpush1.bf16.msra.mxu0 0
          %816 = vmatprep.mubr.bf16.mxu0 0
          %817 = vmatmul.mubr.bf16.gmra.mrb[0].mxu0 %v712
          %v818 = vpop.f32.mrb[0].mxu0
          %v819 = vadd.f32 %v734, %v818
          %v820 = vpop.f32.mrb[0].mxu0
          %v821 = vpop.f32.mrb[0].mxu0
          %v822 = vpop.f32.mrb[0].mxu0
          %823 = vdwg.mxu0
          %824 = vst [vmem:[#allocation9] sm:$0xff] %v819
        $region60: #{tpu_custom_call.1} parent=39 // pred_fallthru
          _
        // Predicated region
        $region61: #{tpu_custom_call.1} parent=39 // pred_check
          %p825 = pneg %p173
        $region62: #{tpu_custom_call.1} parent=39 // pred_check_branch
          %827 = sbr.rel (%p825) target = $region64
        $region63: #{tpu_custom_call.1} parent=39 // pred_region
          %s829 = ssub.s32 128, 128
          %830 = vsyncadd [#allocation5], %s829
          %s831 = smul.addr %s30, 128
          %s832 = scalar_lea.hbm %s5, %s831
          %s834 = sshll.u32 [#allocation9], 4
          %s835 = int_to_ptr.vmem [resolvable:$true] %s834
          %837 = dma.vmem_to_hbm [thread:$0]  %s835, 128, %s832, [#allocation5]
        $region64: #{tpu_custom_call.1} parent=39 // pred_fallthru
          _
        // Predicated region
        $region65: #{tpu_custom_call.1} parent=39 // pred_check
          %p838 = pneg %p199
        $region66: #{tpu_custom_call.1} parent=39 // pred_check_branch
          %840 = sbr.rel (%p838) target = $region68
        $region67: #{tpu_custom_call.1} parent=39 // pred_region
          %s842 = ssub.s32 128, 128
          %843 = vsyncadd [#allocation11], %s842
          %s844 = smul.addr %s30, 128
          %s845 = scalar_lea.hbm %s6, %s844
          %s847 = sshll.u32 [#allocation10], 4
          %s848 = int_to_ptr.vmem [resolvable:$true] %s847
          %850 = dma.vmem_to_hbm [thread:$0]  %s848, 128, %s845, [#allocation11]
        $region68: #{tpu_custom_call.1} parent=39 // pred_fallthru
          _
        // Predicated region
        $region69: #{tpu_custom_call.1} parent=39 // pred_check
          %p851 = pneg %p173
        $region70: #{tpu_custom_call.1} parent=39 // pred_check_branch
          %853 = sbr.rel (%p851) target = $region72
        $region71: #{tpu_custom_call.1} parent=39 // pred_region
          %854 = dma.done [#allocation5], 128
        $region72: #{tpu_custom_call.1} parent=39 // pred_fallthru
          _
        // Predicated region
        $region73: #{tpu_custom_call.1} parent=39 // pred_check
          %p855 = pneg %p199
        $region74: #{tpu_custom_call.1} parent=39 // pred_check_branch
          %857 = sbr.rel (%p855) target = $region76
        $region75: #{tpu_custom_call.1} parent=39 // pred_region
          %858 = dma.done [#allocation11], 128
        $region76: #{tpu_custom_call.1} parent=39 // pred_fallthru
          _
      $region40: #{tpu_custom_call.1} parent=5 // pred_fallthru
        _
      %p859 = scmp.le.s32.totalorder 2, %s21
      // Predicated region
      $region77: #{tpu_custom_call.1} parent=5 // pred_check
        %p860 = pneg %p859
      $region78: #{tpu_custom_call.1} parent=5 // pred_check_branch
        %862 = sbr.rel (%p860) target = $region80
      $region79: #{tpu_custom_call.1} parent=5 // pred_region
        %s863 = ssub.s32 %s21, 2
      $region80: #{tpu_custom_call.1} parent=5 // pred_fallthru
        _
    $region6: #{tpu_custom_call.1} parent=1 // loop_footer
      %s25 = sadd.s32 1, %s21
    $region7: #{tpu_custom_call.1} parent=1 // loop_footer_branch
      %20 = sbr.rel target = $region3
    $region8: #{tpu_custom_call.1} parent=1 // loop_exit
      _
    %864 = vsyncpa [#allocation4], 1
    %s865 = scalar_lea.sflag [#allocation4], 1
    %866 = vsyncpa %s865, 1
    %867 = vsyncpa [#allocation7], 1
    %s868 = scalar_lea.sflag [#allocation7], 1
    %869 = vsyncpa %s868, 1
    %870 = vsyncpa [#allocation5], 1
    %s871 = scalar_lea.sflag [#allocation5], 1
    %872 = vsyncpa %s871, 1
    %873 = vsyncpa [#allocation11], 1

</llo_original>
